<compile_context>
chip_gen: v7x
topology: tpu7x:2x2x1
jax: 0.10.0
libtpu: 0.0.40
codegen_flags: <defaults>
</compile_context>

<pallas_src>
import functools

import jax
import jax.numpy as jnp
from jax.experimental import pallas as pl
from jax.experimental.pallas import tpu as pltpu

_LANE = 128       # pad class axis to a multiple of the 128-wide lane dim
_SUBLANE = 8      # f32 sublane granularity for the batch tile
_NEG_BIG = -1e30  # bias for padded classes -> exp underflows to exactly 0


def _round_up(n, m):
    return (n + m - 1) // m * m


def _linear_softmax_kernel(x_ref, w_ref, b_ref, o_ref):
    """One batch tile: logits = x @ W + b, numerically-stable softmax over classes."""
    x = x_ref[...]                                     # (TB, D)
    w = w_ref[...]                                     # (D, C_pad)  VMEM-resident
    b = b_ref[...].astype(jnp.float32)                 # (1, C_pad), padded cols = -1e30
    logits = jnp.dot(x, w, preferred_element_type=jnp.float32) + b
    m = jnp.max(logits, axis=-1, keepdims=True)
    e = jnp.exp(logits - m)                            # padded cols -> 0
    denom = jnp.sum(e, axis=-1, keepdims=True)
    inv = pl.reciprocal(denom, approx=True)            # EUP slot (otherwise idle here)
    inv = inv * (2.0 - denom * inv)                    # one Newton step -> ~full f32 accuracy
    o_ref[...] = (e * inv).astype(o_ref.dtype)


def prepare_params(weight, bias):
    """One-time layout prep, outside the hot path.
    PyTorch weight (C, D) -> kernel layout (D, C_pad); bias -> (1, C_pad) with -1e30 pad."""
    C, D = weight.shape
    c_pad = _round_up(C, _LANE)
    w_t = jnp.zeros((D, c_pad), weight.dtype).at[:, :C].set(weight.T)
    b_p = jnp.full((1, c_pad), _NEG_BIG, jnp.float32).at[0, :C].set(
        bias.astype(jnp.float32))
    return w_t, b_p


@functools.partial(jax.jit, static_argnames=("num_classes",))
def classification_model_forward(x, w_t, b_p, *, num_classes):
    """softmax(x @ W^T + b, axis=1).  x: (B, D); w_t: (D, C_pad); b_p: (1, C_pad)."""
    B, D = x.shape
    c_pad = w_t.shape[1]

    # Batch tile: up to 256 rows, always a multiple of the f32 sublane (8).
    tb = min(256, _round_up(B, _SUBLANE))
    b_pad = _round_up(B, tb)
    if b_pad != B:
        x = jnp.zeros((b_pad, D), x.dtype).at[:B, :].set(x)

    itemsize = jnp.dtype(x.dtype).itemsize
    # Double-buffered x/out tiles + resident weight & bias (+1 MiB slack); v7x-safe ceiling.
    vmem_bytes = (2 * (tb * D + tb * c_pad) * itemsize
                  + 2 * (D * c_pad * itemsize + c_pad * 4)
                  + (1 << 20))
    vmem_bytes = int(min(max(vmem_bytes, 16 << 20), 48 << 20))

    out = pl.pallas_call(
        _linear_softmax_kernel,
        out_shape=jax.ShapeDtypeStruct((b_pad, c_pad), x.dtype),
        grid=(b_pad // tb,),
        in_specs=[
            pl.BlockSpec((tb, D), lambda i: (i, 0)),      # batch tile (pipelined)
            pl.BlockSpec((D, c_pad), lambda i: (0, 0)),   # weight: constant block index -> resident
            pl.BlockSpec((1, c_pad), lambda i: (0, 0)),   # bias: resident
        ],
        out_specs=pl.BlockSpec((tb, c_pad), lambda i: (i, 0)),  # lane-dense (128-wide) store
        compiler_params=pltpu.CompilerParams(
            dimension_semantics=("parallel",),
            vmem_limit_bytes=vmem_bytes,
        ),
    )(x, w_t, b_p)

    return out[:B, :num_classes]


def _reference(x, weight, bias):
    return jax.nn.softmax(x @ weight.T + bias, axis=1)


if __name__ == "__main__":
    input_dim = 8
    num_classes = 3
    batch = 2

    key = jax.random.PRNGKey(0)
    kx, kw, kb = jax.random.split(key, 3)

    # Deterministic params (mimics PyTorch Linear's uniform(-1/sqrt(D), 1/sqrt(D)))
    bound = 1.0 / jnp.sqrt(jnp.float32(input_dim))
    weight = jax.random.uniform(kw, (num_classes, input_dim), jnp.float32, -bound, bound)
    bias = jax.random.uniform(kb, (num_classes,), jnp.float32, -bound, bound)
    x = jax.random.normal(kx, (batch, input_dim), jnp.float32)

    # Layout prep done once, outside the jitted hot path (no per-call weight.T transpose).
    w_t, b_p = prepare_params(weight, bias)

    out = classification_model_forward(x, w_t, b_p, num_classes=num_classes)
    out = jax.block_until_ready(out)

    ref = _reference(x, weight, bias)
    assert out.shape == (batch, num_classes)
    assert jnp.allclose(out, ref, atol=1e-4, rtol=1e-4)
    assert jnp.allclose(jnp.sum(out, axis=1), jnp.ones((batch,)), atol=1e-4)

    print("KERNEL_OK")
</pallas_src>

<mosaic_0001>
module attributes {stable_mosaic.version = 11 : i64} {
  func.func @_linear_softmax_kernel(%arg0: i32, %arg1: memref<8x8xf32, #tpu.memory_space<vmem>>, %arg2: memref<8x128xf32, #tpu.memory_space<vmem>>, %arg3: memref<1x128xf32, #tpu.memory_space<vmem>>, %arg4: memref<8x128xf32, #tpu.memory_space<vmem>>) attributes {dimension_semantics = [#tpu.dimension_semantics<parallel>], iteration_bounds = array<i64: 1>, scalar_prefetch = 0 : i64, scratch_operands = 0 : i64, tpu.core_type = #tpu.core_type<tc>, window_params = [{transform_indices = @transform_0, window_bounds = array<i64: 8, 8>}, {pipeline_mode = #tpu.pipeline_mode<synchronous>, transform_indices = @transform_1, window_bounds = array<i64: 8, 128>}, {pipeline_mode = #tpu.pipeline_mode<synchronous>, transform_indices = @transform_2, window_bounds = array<i64: 1, 128>}, {transform_indices = @transform_3, window_bounds = array<i64: 8, 128>}]} {
    %c0 = arith.constant 0 : index
    %c0_0 = arith.constant 0 : index
    %0 = vector.load %arg1[%c0, %c0_0] : memref<8x8xf32, #tpu.memory_space<vmem>>, vector<8x8xf32>
    %c0_1 = arith.constant 0 : index
    %c0_2 = arith.constant 0 : index
    %1 = vector.load %arg2[%c0_1, %c0_2] : memref<8x128xf32, #tpu.memory_space<vmem>>, vector<8x128xf32>
    %c0_3 = arith.constant 0 : index
    %c0_4 = arith.constant 0 : index
    %2 = vector.load %arg3[%c0_3, %c0_4] : memref<1x128xf32, #tpu.memory_space<vmem>>, vector<1x128xf32>
    %cst = arith.constant dense<0.000000e+00> : vector<8x128xf32>
    %3 = tpu.matmul %0, %1, %cst {dimension_numbers = #tpu.dot_dimension_numbers<[1], [0], [0], [1], [0, 0, 1, 1], [], []>} : vector<8x8xf32>, vector<8x128xf32>, vector<8x128xf32> -> vector<8x128xf32>
    %4 = vector.broadcast %2 : vector<1x128xf32> to vector<8x128xf32>
    %5 = arith.addf %3, %4 : vector<8x128xf32>
    %cst_5 = arith.constant dense<0xFF800000> : vector<8xf32>
    %6 = vector.multi_reduction <maximumf>, %5, %cst_5 [1] : vector<8x128xf32> to vector<8xf32>
    %7 = vector.shape_cast %6 : vector<8xf32> to vector<8x1xf32>
    %8 = vector.broadcast %7 : vector<8x1xf32> to vector<8x128xf32>
    %9 = arith.subf %5, %8 : vector<8x128xf32>
    %10 = math.exp %9 : vector<8x128xf32>
    %cst_6 = arith.constant dense<0.000000e+00> : vector<8xf32>
    %11 = vector.multi_reduction <add>, %10, %cst_6 [1] : vector<8x128xf32> to vector<8xf32>
    %12 = vector.shape_cast %11 : vector<8xf32> to vector<8x1xf32>
    %13 = tpu.reciprocal %12 {approx = true} : vector<8x1xf32> -> vector<8x1xf32>
    %14 = arith.mulf %12, %13 : vector<8x1xf32>
    %cst_7 = arith.constant 2.000000e+00 : f32
    %15 = vector.broadcast %cst_7 : f32 to vector<8x1xf32>
    %16 = arith.subf %15, %14 : vector<8x1xf32>
    %17 = arith.mulf %13, %16 : vector<8x1xf32>
    %18 = vector.broadcast %17 : vector<8x1xf32> to vector<8x128xf32>
    %19 = arith.mulf %10, %18 : vector<8x128xf32>
    %c0_8 = arith.constant 0 : index
    %c0_9 = arith.constant 0 : index
    %20 = vector.load %arg4[%c0_8, %c0_9] : memref<8x128xf32, #tpu.memory_space<vmem>>, vector<8x128xf32>
    tpu.vector_store %arg4[%c0_8, %c0_9], %19 {strides = array<i32>} : memref<8x128xf32, #tpu.memory_space<vmem>>, vector<8x128xf32>,
    return
  }
  func.func @transform_0(%arg0: i32) -> (i32, i32) {
    %c0_i32 = arith.constant 0 : i32
    %c0_i32_0 = arith.constant 0 : i32
    return %arg0, %c0_i32 : i32, i32
  }
  func.func @transform_1(%arg0: i32) -> (i32, i32) {
    %c0_i32 = arith.constant 0 : i32
    %c0_i32_0 = arith.constant 0 : i32
    %c0_i32_1 = arith.constant 0 : i32
    return %c0_i32, %c0_i32_0 : i32, i32
  }
  func.func @transform_2(%arg0: i32) -> (i32, i32) {
    %c0_i32 = arith.constant 0 : i32
    %c0_i32_0 = arith.constant 0 : i32
    %c0_i32_1 = arith.constant 0 : i32
    return %c0_i32, %c0_i32_0 : i32, i32
  }
  func.func @transform_3(%arg0: i32) -> (i32, i32) {
    %c0_i32 = arith.constant 0 : i32
    %c0_i32_0 = arith.constant 0 : i32
    return %arg0, %c0_i32 : i32, i32
  }
}

</mosaic_0001>

<llo_original>
// kernel: classification_model_forward.1
$region0: #{classification_model_forward.1}
  #allocation0 [shape = 'u32[]', space=smem, size = 0x4, offset = 0x4, fixed_abs, tag = 'smem constant byte address 0x4 - core index']
  #allocation1 [shape = 'u32[144,128]{1,0:T(1,128)}', space=vmem, size = 0x12000, scoped, tag = 'internal scratch']
  %s0 = inlined_call_operand.vmem [shape: f32[8,8], index: 0, kind: input, shape index: {}]
  %s1 = inlined_call_operand.vmem [shape: f32[8,128], index: 1, kind: input, shape index: {}]
  %s2 = inlined_call_operand.vmem [shape: f32[1,128], index: 2, kind: input, shape index: {}]
  %s3 = inlined_call_operand.vmem [shape: f32[8,128], index: 3, kind: output, shape index: {}]
  %s4 = sld [smem:[#allocation0]]
  $region22: #{classification_model_forward.1} parent=0
    _
  %s6 = ssub.s32 1, %s4
  %s7 = scalar_select 0, %s6, %s4
  // Predicated region
  $region2: #{classification_model_forward.1} parent=0 // pred_check
    _
  $region3: #{classification_model_forward.1} parent=0 // pred_check_branch
    %9 = sbr.rel (0) target = $region5
  $region4: #{classification_model_forward.1} parent=0 // pred_region
    _
  $region5: #{classification_model_forward.1} parent=0 // pred_fallthru
    _
  // Predicated region
  $region6: #{classification_model_forward.1} parent=0 // pred_check
    _
  $region7: #{classification_model_forward.1} parent=0 // pred_check_branch
    %11 = sbr.rel (0) target = $region9
  $region8: #{classification_model_forward.1} parent=0 // pred_region
    _
  $region9: #{classification_model_forward.1} parent=0 // pred_fallthru
    _
  // Predicated region
  $region10: #{classification_model_forward.1} parent=0 // pred_check
    _
  $region11: #{classification_model_forward.1} parent=0 // pred_check_branch
    %13 = sbr.rel (0) target = $region13
  $region12: #{classification_model_forward.1} parent=0 // pred_region
    _
  $region13: #{classification_model_forward.1} parent=0 // pred_fallthru
    _
  %v14 = vld [vmem:[%s0] sm:$0xff]
  %v15 = vld [vmem:[%s1] sm:$0xff]
  %v16 = vld [vmem:[%s2] sm:$0x1]
  %v18 = vlaneseq
  %v19 = vshrl.u32 %v18, 7
  %v20 = vsub.s32 0, %v19
  %v21 = vrot.slane %v16, %v20
  %vm23 = vcmask 64512
  %v25 = vsel %vm23, %v14, 0
  %27 = vmatprep.subr.mxu0 0.0
  %28 = vmatpush1.msra.mxu0 %v15
  %29 = vmatprep.subr.mxu0 0.0
  %30 = vmatpush1.msra.mxu0 0.0
  %31 = vmatprep.subr.mxu0 0.0
  %32 = vmatpush1.msra.mxu0 0.0
  %33 = vmatprep.subr.mxu0 0.0
  %34 = vmatpush1.msra.mxu0 0.0
  %35 = vmatprep.subr.mxu0 0.0
  %36 = vmatpush1.msra.mxu0 0.0
  %37 = vmatprep.subr.mxu0 0.0
  %38 = vmatpush1.msra.mxu0 0.0
  %39 = vmatprep.subr.mxu0 0.0
  %40 = vmatpush1.msra.mxu0 0.0
  %41 = vmatprep.subr.mxu0 0.0
  %42 = vmatpush1.msra.mxu0 0.0
  %43 = vmatprep.subr.mxu0 0.0
  %44 = vmatpush1.msra.mxu0 0.0
  %45 = vmatprep.subr.mxu0 0.0
  %46 = vmatpush1.msra.mxu0 0.0
  %47 = vmatprep.subr.mxu0 0.0
  %48 = vmatpush1.msra.mxu0 0.0
  %49 = vmatprep.subr.mxu0 0.0
  %50 = vmatpush1.msra.mxu0 0.0
  %51 = vmatprep.subr.mxu0 0.0
  %52 = vmatpush1.msra.mxu0 0.0
  %53 = vmatprep.subr.mxu0 0.0
  %54 = vmatpush1.msra.mxu0 0.0
  %55 = vmatprep.subr.mxu0 0.0
  %56 = vmatpush1.msra.mxu0 0.0
  %57 = vmatprep.subr.mxu0 0.0
  %58 = vmatpush1.msra.mxu0 0.0
  %59 = vmatprep.subr.mxu0 0.0
  %60 = vmatpush1.msra.mxu0 0.0
  %61 = vmatprep.subr.mxu0 0.0
  %62 = vmatpush1.msra.mxu0 0.0
  %63 = vmatprep.subr.mxu0 0.0
  %64 = vmatpush1.msra.mxu0 0.0
  %65 = vmatprep.subr.mxu0 0.0
  %66 = vmatpush1.msra.mxu0 0.0
  %67 = vmatprep.subr.mxu0 0.0
  %68 = vmatpush1.msra.mxu0 0.0
  %69 = vmatprep.subr.mxu0 0.0
  %70 = vmatpush1.msra.mxu0 0.0
  %71 = vmatprep.subr.mxu0 0.0
  %72 = vmatpush1.msra.mxu0 0.0
  %73 = vmatprep.subr.mxu0 0.0
  %74 = vmatpush1.msra.mxu0 0.0
  %75 = vmatprep.subr.mxu0 0.0
  %76 = vmatpush1.msra.mxu0 0.0
  %77 = vmatprep.subr.mxu0 0.0
  %78 = vmatpush1.msra.mxu0 0.0
  %79 = vmatprep.subr.mxu0 0.0
  %80 = vmatpush1.msra.mxu0 0.0
  %81 = vmatprep.subr.mxu0 0.0
  %82 = vmatpush1.msra.mxu0 0.0
  %83 = vmatprep.subr.mxu0 0.0
  %84 = vmatpush1.msra.mxu0 0.0
  %85 = vmatprep.subr.mxu0 0.0
  %86 = vmatpush1.msra.mxu0 0.0
  %87 = vmatprep.subr.mxu0 0.0
  %88 = vmatpush1.msra.mxu0 0.0
  %89 = vmatprep.subr.mxu0 0.0
  %90 = vmatpush1.msra.mxu0 0.0
  %91 = vmatprep.mubr.f32.mxu0 0.0
  %92 = vmatmul.mubr.f32.gmra.mrb[0].mxu0 %v25
  %v93 = vpop.f32.mrb[0].mxu0
  %v94 = vadd.f32 %v21, %v93
  %v95 = vpop.f32.mrb[0].mxu0
  %96 = vdwg.mxu0
  %97 = vmax.xlane.f32.xlu0 %v94
  %v98 = vpop.xlane.xlu0 %97
  %v99 = vsub.f32 %v94, %v98
  %v100 = vmul.f32 %v99, 1.442695
  %v101 = vpow.pop %v100
  %102 = vadd.xlane.f32.xlu0 %v101
  %v103 = vpop.xlane.xlu0 %102
  %v104 = vrcp.pop %v103
  %v105 = vmul.f32 %v103, %v104
  %v106 = vsub.f32 2.0, %v105
  %v107 = vmul.f32 %v104, %v106
  %v108 = vmul.f32 %v101, %v107
  %109 = vst [vmem:[%s3] sm:$0xff] %v108
  // Predicated region
  $region14: #{classification_model_forward.1} parent=0 // pred_check
    _
  $region15: #{classification_model_forward.1} parent=0 // pred_check_branch
    %111 = sbr.rel (0) target = $region17
  $region16: #{classification_model_forward.1} parent=0 // pred_region
    _
  $region17: #{classification_model_forward.1} parent=0 // pred_fallthru
    _
  // Predicated region
  $region18: #{classification_model_forward.1} parent=0 // pred_check
    _
  $region19: #{classification_model_forward.1} parent=0 // pred_check_branch
    %113 = sbr.rel (0) target = $region21
  $region20: #{classification_model_forward.1} parent=0 // pred_region
    _
  $region21: #{classification_model_forward.1} parent=0 // pred_fallthru
    _

</llo_original>
